<compile_context>
chip_gen: v7x
topology: tpu7x:2x2x1
jax: 0.10.0
libtpu: 0.0.40
codegen_flags: <defaults>
</compile_context>

<pallas_src>
import functools
import math

import jax
import jax.numpy as jnp
from jax import lax
from jax.experimental import pallas as pl
from jax.experimental.pallas import tpu as pltpu


def _round_up(a, b):
    return ((a + b - 1) // b) * b


# Max lane width for which the running accumulator / weight block are kept
# resident in vregs inside the kernel (beyond this we accumulate into the
# resident VMEM output block instead, to avoid register spills).
_CARRY_LANE_CAP = 512


def _num_tensorcores():
    """Best-effort TensorCore count (v7x has 2 per chip); defaults to 1."""
    try:
        info = pltpu.get_tpu_info()
    except Exception:
        return 1
    for name in ("num_cores", "core_count", "num_tensorcores",
                 "tensorcore_count", "num_cores_per_chip"):
        value = getattr(info, name, None)
        try:
            value = int(value)
        except (TypeError, ValueError):
            continue
        if value >= 1:
            return value
    return 1


def _value_kernel(x_ref, w_ref, o_ref, *, rows_total, need_mask, carry_acc, unroll):
    """One grid step: fold a (tile_rows, W) slab of x*w into the resident
    (1, 8, W) per-lane partial-sum output block.

    x_ref: (tile_rows, W) input dtype      w_ref: (slab, W) f32 (resident)
    o_ref: (1, 8, W) f32 accumulator block (resident across the reduction axis)
    """
    j = pl.program_id(1)
    tile_rows, lane_w = x_ref.shape
    slab = w_ref.shape[0]
    n_slabs = tile_rows // slab

    @pl.when(j == 0)
    def _():
        o_ref[...] = jnp.zeros_like(o_ref)

    w_blk = w_ref[...]                                     # (slab, W) f32

    if need_mask:
        # Global lane-row index of the first row of this block; rows >= rows_total
        # are out-of-bounds garbage (partial last block) and must contribute 0.
        row_start = (pl.program_id(0) * pl.num_programs(1) + j) * tile_rows
        sub_iota = lax.broadcasted_iota(jnp.int32, (slab, lane_w), 0)

    def load_slab(i):
        r = pl.multiple_of(i * slab, slab)
        xs = x_ref[pl.ds(r, slab), :].astype(jnp.float32)  # upcast per-slab (bf16 ok)
        if need_mask:
            rows_idx = row_start + i * slab + sub_iota
            xs = jnp.where(rows_idx < rows_total, xs, 0.0)
        return xs

    def fold(prod):
        # Fold a (slab, W) product into an (8, W) partial sum (slab is 8 or 16).
        if slab == 8:
            return prod
        return prod[:8] + prod[8:]

    if carry_acc:
        # Accumulator lives in vregs for the whole step; o_ref written once.
        def body(i, acc):
            return acc + fold(load_slab(i) * w_blk)

        acc = lax.fori_loop(0, n_slabs, body,
                            jnp.zeros((8, lane_w), jnp.float32), unroll=unroll)
        o_ref[...] += acc[None]
    else:
        # Wide lane_w: accumulate into the resident VMEM output block instead
        # (VMEM round trip is tiny vs. the HBM DMA and avoids vreg spills).
        def body(i, carry):
            o_ref[...] += fold(load_slab(i) * w_blk)[None]
            return carry

        lax.fori_loop(0, n_slabs, body, jnp.int32(0), unroll=unroll)


def value_net_forward(x, weight, bias, *, tile_bytes=8 << 20):
    """Pallas forward pass of ValueNet.

    x:      (..., feature_dim) float32 or bfloat16 (bf16 read natively)
    weight: (1, feature_dim)   float32  (torch nn.Linear weight)
    bias:   (1,)               float32
    returns: scalar float32 == mean over all flattened rows of fc(x)
    """
    d = weight.shape[1]
    if not jnp.issubdtype(x.dtype, jnp.floating):
        x = x.astype(jnp.float32)
    x2d = x.reshape(-1, d)                   # zero-copy bitcast (torch reshape semantics)
    n_rows = x2d.shape[0]
    total = n_rows * d
    itemsize = jnp.dtype(x2d.dtype).itemsize
    slab = 16 if itemsize == 2 else 8        # packed-sublane friendly slab for 16-bit

    w_flat = weight.reshape(-1).astype(jnp.float32)

    # ---- Zero-copy view selection (NO jnp.pad of x: padding would cost a full
    # ---- extra HBM read+write of x, dwarfing every in-kernel optimization).
    if d % 128 == 0:
        lane_w = d
        x_view, rows = x2d, n_rows
    else:
        lane_w = (d * 128) // math.gcd(d, 128)            # lcm(d, 128)
        if lane_w <= _CARRY_LANE_CAP and total % lane_w == 0:
            # Lane-dense zero-copy view; lane l always holds feature (l % d).
            x_view = x2d.reshape(total // lane_w, lane_w)
            rows = total // lane_w
        else:
            # General fallback: natural (n_rows, d) layout; the last (partial)
            # block is row-masked in-kernel. Lanes are only partially dense,
            # but HBM traffic (the real bottleneck) stays 1x.
            lane_w = d
            x_view, rows = x2d, n_rows

    # Weight pattern is row-invariant in every path (lane_w % d == 0):
    # replicate it across lanes with period d and across `slab` sublanes so the
    # in-kernel multiply is whole-vreg vs whole-vreg (no per-step broadcast).
    w_block = jnp.tile(w_flat, lane_w // d)
    w_block = jnp.tile(w_block[None, :], (slab, 1))        # (slab, lane_w) f32

    # ---- Tile sizing: ~tile_bytes of x per grid step (multiple of `slab` rows)
    # ---- so the ~0.35 us/step overhead is negligible even at v7x HBM speed.
    bytes_per_row = lane_w * itemsize
    rows_per_tile = max(slab, (tile_bytes // bytes_per_row) // slab * slab)
    rows_per_tile = min(rows_per_tile, _round_up(rows, slab))

    # Leading "parallel" axis only when there really are >= 2 TensorCores (v7x);
    # on single-TC parts it would just add an output-block switch for nothing.
    num_parallel = 2 if (_num_tensorcores() >= 2 and rows > rows_per_tile) else 1

    steps = pl.cdiv(rows, rows_per_tile * num_parallel)
    rows_padded = steps * rows_per_tile * num_parallel
    need_mask = rows_padded > rows           # partial last block -> mask OOB rows

    n_slabs = rows_per_tile // slab
    unroll = 1
    for u in (8, 4, 2):                      # pick an unroll factor dividing n_slabs
        if n_slabs % u == 0:
            unroll = u
            break

    kernel = functools.partial(
        _value_kernel,
        rows_total=rows,
        need_mask=need_mask,
        carry_acc=(lane_w <= _CARRY_LANE_CAP),
        unroll=unroll,
    )

    partials = pl.pallas_call(
        kernel,
        out_shape=jax.ShapeDtypeStruct((num_parallel, 8, lane_w), jnp.float32),
        grid=(num_parallel, steps),
        in_specs=[
            pl.BlockSpec((rows_per_tile, lane_w), lambda p, j: (p * steps + j, 0)),
            pl.BlockSpec((slab, lane_w), lambda p, j: (0, 0)),   # weight (resident)
        ],
        out_specs=pl.BlockSpec((1, 8, lane_w), lambda p, j: (p, 0, 0)),
        compiler_params=pltpu.CompilerParams(
            dimension_semantics=("parallel", "arbitrary"),
            # ~2 x 8 MiB double-buffered x + tiny weight/output blocks: well
            # inside 32 MiB scoped VMEM on v5e/v6e/v7x.
            vmem_limit_bytes=32 * 1024 * 1024,
        ),
        cost_estimate=pl.CostEstimate(
            flops=2 * int(n_rows) * int(d),
            transcendentals=0,
            bytes_accessed=int(total) * int(itemsize),
        ),
    )(x_view, w_block)

    # Tiny epilogue (O(8 * lane_w) elems): cross-lane reduce, mean, bias. Kept in
    # jnp because the num_parallel partitions each own a separate partial block.
    return jnp.sum(partials) / jnp.float32(n_rows) + bias[0].astype(jnp.float32)


def value_net_reference(x, weight, bias):
    d = weight.shape[1]
    x2d = x.reshape(-1, d).astype(jnp.float32)
    y = x2d @ weight.T + bias                # (N, 1)
    return jnp.mean(y[:, 0])


if __name__ == "__main__":
    key = jax.random.PRNGKey(0)

    def make_params(k, d):
        kw, kb = jax.random.split(k)
        bound = 1.0 / (d ** 0.5)
        w = jax.random.uniform(kw, (1, d), jnp.float32, -bound, bound)
        b = jax.random.uniform(kb, (1,), jnp.float32, -bound, bound)
        return w, b

    # 1) canonical small case (feature_dim=32): zero-copy lane-dense lcm path
    # 2) bf16 activations read natively through the same path
    # 3) ragged rows + narrow features: masked natural-layout fallback path
    # 4) feature_dim % 128 == 0: direct zero-copy layout
    # 5) wide features + ragged rows: VMEM-resident accumulation + masking
    cases = [
        ((4, 8, 32), jnp.float32),
        ((4, 16, 32), jnp.bfloat16),
        ((37, 20), jnp.float32),
        ((2, 24, 256), jnp.float32),
        ((19, 1024), jnp.float32),
    ]

    for idx, (shape, dt) in enumerate(cases):
        k = jax.random.fold_in(key, idx)
        kx, kp = jax.random.split(k)
        d = shape[-1]
        x = jax.random.normal(kx, shape, jnp.float32).astype(dt)
        w, b = make_params(kp, d)

        out = jax.block_until_ready(value_net_forward(x, w, b))
        ref = value_net_reference(x.astype(jnp.float32), w, b)
        assert jnp.allclose(out, ref, atol=1e-5, rtol=1e-5), (shape, dt, out, ref)

    print("KERNEL_OK")
</pallas_src>

<mosaic_0001>
module attributes {stable_mosaic.version = 11 : i64} {
  func.func @_value_kernel(%arg0: i32, %arg1: i32, %arg2: memref<8x128xf32, #tpu.memory_space<vmem>>, %arg3: memref<8x128xf32, #tpu.memory_space<vmem>>, %arg4: memref<1x8x128xf32, #tpu.memory_space<vmem>>) attributes {dimension_semantics = [#tpu.dimension_semantics<parallel>, #tpu.dimension_semantics<arbitrary>], iteration_bounds = array<i64: 1, 1>, scalar_prefetch = 0 : i64, scratch_operands = 0 : i64, tpu.core_type = #tpu.core_type<tc>, window_params = [{transform_indices = @transform_0, window_bounds = array<i64: 8, 128>}, {pipeline_mode = #tpu.pipeline_mode<synchronous>, transform_indices = @transform_1, window_bounds = array<i64: 8, 128>}, {transform_indices = @transform_2, window_bounds = array<i64: 1, 8, 128>}]} {
    %c0_i32 = arith.constant 0 : i32
    %0 = arith.cmpi eq, %arg1, %c0_i32 : i32
    %1 = arith.extui %0 : i1 to i32
    %c0_i32_0 = arith.constant 0 : i32
    %2 = arith.cmpi ne, %1, %c0_i32_0 : i32
    scf.if %2 {
      %cst_10 = arith.constant 0.000000e+00 : f32
      %15 = vector.broadcast %cst_10 : f32 to vector<1x8x128xf32>
      %c0_11 = arith.constant 0 : index
      %c0_12 = arith.constant 0 : index
      %c0_13 = arith.constant 0 : index
      %16 = vector.load %arg4[%c0_11, %c0_12, %c0_13] : memref<1x8x128xf32, #tpu.memory_space<vmem>>, vector<1x8x128xf32>
      tpu.vector_store %arg4[%c0_11, %c0_12, %c0_13], %15 {strides = array<i32>} : memref<1x8x128xf32, #tpu.memory_space<vmem>>, vector<1x8x128xf32>,
    } else {
    }
    %c0 = arith.constant 0 : index
    %c0_1 = arith.constant 0 : index
    %3 = vector.load %arg3[%c0, %c0_1] : memref<8x128xf32, #tpu.memory_space<vmem>>, vector<8x128xf32>
    %cst = arith.constant 0.000000e+00 : f32
    %4 = vector.broadcast %cst : f32 to vector<8x128xf32>
    %c0_i32_2 = arith.constant 0 : i32
    %c8_i32 = arith.constant 8 : i32
    %5 = arith.muli %c0_i32_2, %c8_i32 : i32
    %6 = tpu.assume_multiple %5, 8 : i32
    %7 = arith.index_cast %6 : i32 to index
    %c0_3 = arith.constant 0 : index
    %8 = vector.load %arg2[%7, %c0_3] : memref<8x128xf32, #tpu.memory_space<vmem>>, vector<8x128xf32>
    %9 = arith.mulf %8, %3 : vector<8x128xf32>
    %10 = arith.addf %4, %9 : vector<8x128xf32>
    %c1_i32 = arith.constant 1 : i32
    %c0_4 = arith.constant 0 : index
    %c0_5 = arith.constant 0 : index
    %c0_6 = arith.constant 0 : index
    %11 = vector.load %arg4[%c0_4, %c0_5, %c0_6] : memref<1x8x128xf32, #tpu.memory_space<vmem>>, vector<1x8x128xf32>
    %12 = vector.shape_cast %10 : vector<8x128xf32> to vector<1x8x128xf32>
    %13 = arith.addf %11, %12 : vector<1x8x128xf32>
    %c0_7 = arith.constant 0 : index
    %c0_8 = arith.constant 0 : index
    %c0_9 = arith.constant 0 : index
    %14 = vector.load %arg4[%c0_7, %c0_8, %c0_9] : memref<1x8x128xf32, #tpu.memory_space<vmem>>, vector<1x8x128xf32>
    tpu.vector_store %arg4[%c0_7, %c0_8, %c0_9], %13 {strides = array<i32>} : memref<1x8x128xf32, #tpu.memory_space<vmem>>, vector<1x8x128xf32>,
    return
  }
  func.func @transform_0(%arg0: i32, %arg1: i32) -> (i32, i32) {
    %c1_i32 = arith.constant 1 : i32
    %0 = arith.muli %arg0, %c1_i32 : i32
    %1 = arith.addi %0, %arg1 : i32
    %c0_i32 = arith.constant 0 : i32
    %c0_i32_0 = arith.constant 0 : i32
    return %1, %c0_i32 : i32, i32
  }
  func.func @transform_1(%arg0: i32, %arg1: i32) -> (i32, i32) {
    %c0_i32 = arith.constant 0 : i32
    %c0_i32_0 = arith.constant 0 : i32
    %c0_i32_1 = arith.constant 0 : i32
    return %c0_i32, %c0_i32_0 : i32, i32
  }
  func.func @transform_2(%arg0: i32, %arg1: i32) -> (i32, i32, i32) {
    %c0_i32 = arith.constant 0 : i32
    %c0_i32_0 = arith.constant 0 : i32
    %c0_i32_1 = arith.constant 0 : i32
    return %arg0, %c0_i32, %c0_i32_0 : i32, i32, i32
  }
}

</mosaic_0001>

<llo_original>
// kernel: tpu_custom_call.1
$region0: #{tpu_custom_call.1}
  #allocation0 [shape = 'u32[]', space=smem, size = 0x4, offset = 0x4, fixed_abs, tag = 'smem constant byte address 0x4 - core index']
  #allocation1 [shape = 'u32[144,128]{1,0:T(1,128)}', space=vmem, size = 0x12000, scoped, tag = 'internal scratch']
  %s0 = inlined_call_operand.hbm [shape: f32[8,128], index: 0, kind: input, shape index: {}]
  %s1 = inlined_call_operand.hbm [shape: f32[8,128], index: 1, kind: input, shape index: {}]
  %s2 = inlined_call_operand.hbm [shape: f32[1,8,128], index: 2, kind: output, shape index: {}]
  %s3 = sld [smem:[#allocation0]]
  $region30: #{tpu_custom_call.1} parent=0
    _
  %s5 = ssub.s32 1, %s3
  %s6 = scalar_select 0, %s5, %s3
  $region1: #{tpu_custom_call.1} parent=0
    #allocation2 [shape = 'u8[4096]{0}', space=vmem, size = 0x1000, scoped, tag = 'input window, operand 0, single buffered']
    #allocation3 [shape = 's32[1]{0}', space=sflag, size = 0x4, scoped, tag = 'scoped memory for tpu_custom_call.1']
    #allocation4 [shape = 's32[1]{0}', space=sflag, size = 0x4, scoped, tag = 'scoped memory for tpu_custom_call.1']
    #allocation5 [shape = 'u8[4096]{0}', space=vmem, size = 0x1000, scoped, tag = 'input window, operand 1, single buffered']
    #allocation6 [shape = 's32[1]{0}', space=sflag, size = 0x4, scoped, tag = 'scoped memory for tpu_custom_call.1']
    #allocation7 [shape = 'u8[4096]{0}', space=vmem, size = 0x1000, scoped, tag = 'output window, operand 0, single buffered']
    %7 = vsyncpa [#allocation3], 0
    %8 = vsyncpa [#allocation6], 0
    %9 = vsyncpa [#allocation4], 0
    // Predicated region
    $region2: #{tpu_custom_call.1} parent=1 // pred_check
      _
    $region3: #{tpu_custom_call.1} parent=1 // pred_check_branch
      %11 = sbr.rel (0) target = $region5
    $region4: #{tpu_custom_call.1} parent=1 // pred_region
      %s12 = sadd.s32 0, 0
      %s14 = ssub.s32 128, 128
      %15 = vsyncadd [#allocation3], %s14
      %s16 = smul.addr %s12, 128
      %s17 = scalar_lea.hbm %s0, %s16
      %s19 = sshll.u32 [#allocation2], 4
      %s20 = int_to_ptr.vmem [resolvable:$true] %s19
      %22 = dma.hbm_to_vmem [thread:$0]  %s17, 128, %s20, [#allocation3]
    $region5: #{tpu_custom_call.1} parent=1 // pred_fallthru
      _
    // Predicated region
    $region6: #{tpu_custom_call.1} parent=1 // pred_check
      _
    $region7: #{tpu_custom_call.1} parent=1 // pred_check_branch
      %24 = sbr.rel (0) target = $region9
    $region8: #{tpu_custom_call.1} parent=1 // pred_region
      %s26 = ssub.s32 128, 128
      %27 = vsyncadd [#allocation6], %s26
      %s29 = sshll.u32 [#allocation5], 4
      %s30 = int_to_ptr.vmem [resolvable:$true] %s29
      %32 = dma.hbm_to_vmem [thread:$0]  %s1, 128, %s30, [#allocation6]
    $region9: #{tpu_custom_call.1} parent=1 // pred_fallthru
      _
    // Predicated region
    $region10: #{tpu_custom_call.1} parent=1 // pred_check
      _
    $region11: #{tpu_custom_call.1} parent=1 // pred_check_branch
      %34 = sbr.rel (0) target = $region13
    $region12: #{tpu_custom_call.1} parent=1 // pred_region
      %35 = dma.done [#allocation3], 128
    $region13: #{tpu_custom_call.1} parent=1 // pred_fallthru
      _
    // Predicated region
    $region14: #{tpu_custom_call.1} parent=1 // pred_check
      _
    $region15: #{tpu_custom_call.1} parent=1 // pred_check_branch
      %37 = sbr.rel (0) target = $region17
    $region16: #{tpu_custom_call.1} parent=1 // pred_region
      %38 = dma.done [#allocation6], 128
    $region17: #{tpu_custom_call.1} parent=1 // pred_fallthru
      _
    %s39 = sadd.s32 0, 0
    %p40 = scmp.eq.s32.totalorder 0, 0
    // Predicated region
    $region18: #{tpu_custom_call.1} parent=1 // pred_check
      %p41 = pneg %p40
    $region19: #{tpu_custom_call.1} parent=1 // pred_check_branch
      %43 = sbr.rel (%p41) target = $region21
    $region20: #{tpu_custom_call.1} parent=1 // pred_region
      %44 = vst [vmem:[#allocation7] sm:$0xff] 0.0
    $region21: #{tpu_custom_call.1} parent=1 // pred_fallthru
      _
    %v45 = vld [vmem:[#allocation5] sm:$0xff]
    %v46 = vld [vmem:[#allocation2] sm:$0xff]
    %v47 = vmul.f32 %v46, %v45
    %v48 = vadd.f32 %v47, 0.0
    %v49 = vld [vmem:[#allocation7] sm:$0xff]
    %v50 = vadd.f32 %v49, %v48
    %51 = vst [vmem:[#allocation7] sm:$0xff] %v50
    // Predicated region
    $region22: #{tpu_custom_call.1} parent=1 // pred_check
      _
    $region23: #{tpu_custom_call.1} parent=1 // pred_check_branch
      %53 = sbr.rel (0) target = $region25
    $region24: #{tpu_custom_call.1} parent=1 // pred_region
      %s55 = ssub.s32 128, 128
      %56 = vsyncadd [#allocation4], %s55
      %s58 = sshll.u32 [#allocation7], 4
      %s59 = int_to_ptr.vmem [resolvable:$true] %s58
      %61 = dma.vmem_to_hbm [thread:$0]  %s59, 128, %s2, [#allocation4]
    $region25: #{tpu_custom_call.1} parent=1 // pred_fallthru
      _
    // Predicated region
    $region26: #{tpu_custom_call.1} parent=1 // pred_check
      _
    $region27: #{tpu_custom_call.1} parent=1 // pred_check_branch
      %63 = sbr.rel (0) target = $region29
    $region28: #{tpu_custom_call.1} parent=1 // pred_region
      %64 = dma.done [#allocation4], 128
    $region29: #{tpu_custom_call.1} parent=1 // pred_fallthru
      _
    %65 = vsyncpa [#allocation3], 1
    %66 = vsyncpa [#allocation6], 1
    %67 = vsyncpa [#allocation4], 1

</llo_original>
